<compile_context>
chip_gen: v5e
topology: v5e:2x2
jax: 0.10.0
libtpu: 0.0.40
codegen_flags: <defaults>
</compile_context>

<pallas_src>
import jax
import jax.numpy as jnp
from jax.experimental import pallas as pl
from jax.experimental.pallas import tpu as pltpu


# ----------------------------------------------------------------------------
# Kernel: one (Bt, N) tile of points; 3 matmuls on (Bt*N, ·) row-major slabs.
# ----------------------------------------------------------------------------
def _seg_head_kernel(x_ref, ebias_ref,
                     w1_ref, b1_ref, w23_ref, wo2_ref, bo2_ref,
                     out_ref):
    Bt, N, Cin = x_ref.shape
    H = w1_ref.shape[1]
    C = wo2_ref.shape[1]

    x = x_ref[...].reshape(Bt * N, Cin)                               # bf16 rows

    # --- mlp_in[0] + ReLU ---
    h = jnp.dot(x, w1_ref[...], preferred_element_type=jnp.float32) + b1_ref[...]
    h = jnp.maximum(h, 0.0).astype(jnp.bfloat16)

    # --- folded (mlp_in[2] @ mlp_out[0]-x) weight; encoder branch + all
    #     intermediate biases arrive as a per-batch bias ---
    z = jnp.dot(h, w23_ref[...], preferred_element_type=jnp.float32)  # (Bt*N, H)
    z = z.reshape(Bt, N, H) + ebias_ref[...]                          # (Bt,1,H) bias
    z = jnp.maximum(z, 0.0).astype(jnp.bfloat16).reshape(Bt * N, H)

    # --- mlp_out[2] ---
    out = jnp.dot(z, wo2_ref[...], preferred_element_type=jnp.float32) + bo2_ref[...]
    out_ref[...] = out.reshape(Bt, N, C)                              # exact-C f32 store


def _round_up(v, m):
    return ((v + m - 1) // m) * m


def _choose_block_b(B, N, bytes_per_row, vmem_budget=24 * 1024 * 1024, grid_target=4):
    """Largest divisor of B that fits the VMEM budget and keeps grid >= min(grid_target, B)."""
    cap_rows = max(N, vmem_budget // max(bytes_per_row, 1))
    cap_b = max(1, min(B, cap_rows // max(N, 1)))
    target = min(grid_target, B)
    best = 1
    for bb in range(1, cap_b + 1):
        if B % bb == 0 and B // bb >= target:
            best = bb
    return best


def _full_spec(arr):
    nd = arr.ndim
    return pl.BlockSpec(arr.shape, lambda b, _nd=nd: (0,) * _nd)


def segmentation_head_forward(x, params, *, block_b=None):
    """x: (B, N, C_in) f32.  params: dict of (in,out)-layout weights / (1,out) biases."""
    B, N, Cin = x.shape
    H = params["w1"].shape[1]
    num_classes = params["wo2"].shape[1]

    # ---- encoder (synthetic) + fused embedding/bias branch, hoisted to f32 JAX ----
    pooled = jnp.mean(x, axis=1)                                      # (B, Cin)
    emb = pooled @ params["we"] + params["be"]                        # (B, E)
    #  z_pre = h_relu @ (w2@wo1x) + [ b2@wo1x + emb@wo1e + bo1 ]   (exact in f32)
    emb_bias = emb @ params["wo1e"] + params["bo1"] + params["b2"] @ params["wo1x"]  # (B, H)
    w23_f32 = params["w2"] @ params["wo1x"]                           # (H, H) fold in f32

    # ---- TPU-friendly padding / casting ----
    Cin_pad = _round_up(Cin, 8)                 # sublane multiple for the w1 tile
    # per-row VMEM estimate (double-buffered x + out, plus activation slack)
    bytes_per_row = 2 * (Cin_pad * 2) + 2 * (num_classes * 4) + 8 * H
    if block_b is None:
        block_b = _choose_block_b(B, N, bytes_per_row)
    assert B % block_b == 0, "block_b must divide B (no padded garbage rows)"

    x_p = jnp.zeros((B, N, Cin_pad), jnp.bfloat16)
    x_p = x_p.at[:, :, :Cin].set(x.astype(jnp.bfloat16))
    ebias = emb_bias[:, None, :].astype(jnp.float32)                  # (B, 1, H)

    w1 = jnp.zeros((Cin_pad, H), jnp.bfloat16).at[:Cin].set(params["w1"].astype(jnp.bfloat16))
    b1 = params["b1"].astype(jnp.float32)
    w23 = w23_f32.astype(jnp.bfloat16)
    wo2 = params["wo2"].astype(jnp.bfloat16)
    bo2 = params["bo2"].astype(jnp.float32)

    weights = (w1, b1, w23, wo2, bo2)
    grid = (B // block_b,)

    in_specs = [
        pl.BlockSpec((block_b, N, Cin_pad), lambda b: (b, 0, 0)),     # x tile
        pl.BlockSpec((block_b, 1, H), lambda b: (b, 0, 0)),           # per-batch bias
    ] + [_full_spec(w) for w in weights]

    out_spec = pl.BlockSpec((block_b, N, num_classes), lambda b: (b, 0, 0))

    out = pl.pallas_call(
        _seg_head_kernel,
        out_shape=jax.ShapeDtypeStruct((B, N, num_classes), jnp.float32),
        grid_spec=pltpu.PrefetchScalarGridSpec(
            num_scalar_prefetch=0,
            grid=grid,
            in_specs=in_specs,
            out_specs=out_spec,
        ),
        compiler_params=pltpu.CompilerParams(
            dimension_semantics=("parallel",),
            vmem_limit_bytes=32 * 1024 * 1024,   # safe on v5e/v6e/v7x; footprint is small post-slimming
        ),
    )(x_p, ebias, *weights)

    return out


# ----------------------------------------------------------------------------
# References
# ----------------------------------------------------------------------------
def _reference_forward_f32(x, p):
    """Pure f32 reference mirroring the PyTorch module (explicit concat path)."""
    pooled = jnp.mean(x, axis=1)
    emb = pooled @ p["we"] + p["be"]
    h = jnp.maximum(x @ p["w1"] + p["b1"], 0.0)
    h = h @ p["w2"] + p["b2"]
    emb_rep = jnp.repeat(emb[:, None, :], x.shape[1], axis=1)
    z = jnp.concatenate([h, emb_rep], axis=-1)
    wo1 = jnp.concatenate([p["wo1x"], p["wo1e"]], axis=0)
    z = jnp.maximum(z @ wo1 + p["bo1"], 0.0)
    return z @ p["wo2"] + p["bo2"]


def _reference_forward_matched(x, p):
    """Reference with the same fold + bf16-input / f32-accumulate precision as the kernel."""
    bf = lambda a: a.astype(jnp.bfloat16)
    pooled = jnp.mean(x, axis=1)
    emb = pooled @ p["we"] + p["be"]
    ebias = emb @ p["wo1e"] + p["bo1"] + p["b2"] @ p["wo1x"]          # (B, H) f32
    w23 = bf(p["w2"] @ p["wo1x"])                                     # folded, f32 -> bf16
    h = jnp.dot(bf(x), bf(p["w1"]), preferred_element_type=jnp.float32) + p["b1"]
    h = bf(jnp.maximum(h, 0.0))
    z = jnp.dot(h, w23, preferred_element_type=jnp.float32) + ebias[:, None, :]
    z = bf(jnp.maximum(z, 0.0))
    return jnp.dot(z, bf(p["wo2"]), preferred_element_type=jnp.float32) + p["bo2"]


def _init_params(key, in_channels, embedding_size, num_classes, hidden_dim):
    ks = jax.random.split(key, 5)

    def lin(k, fan_in, fan_out):
        kw, kb = jax.random.split(k)
        bound = 1.0 / jnp.sqrt(fan_in)
        w = jax.random.uniform(kw, (fan_in, fan_out), jnp.float32, -bound, bound)
        b = jax.random.uniform(kb, (1, fan_out), jnp.float32, -bound, bound)
        return w, b

    we, be = lin(ks[0], in_channels, embedding_size)                 # synthetic encoder
    w1, b1 = lin(ks[1], in_channels, hidden_dim)                     # mlp_in[0]
    w2, b2 = lin(ks[2], hidden_dim, hidden_dim)                      # mlp_in[2]
    wo1, bo1 = lin(ks[3], embedding_size + hidden_dim, hidden_dim)   # mlp_out[0]
    wo2, bo2 = lin(ks[4], hidden_dim, num_classes)                   # mlp_out[2]
    return {
        "we": we, "be": be,
        "w1": w1, "b1": b1,
        "w2": w2, "b2": b2,
        "wo1x": wo1[:hidden_dim],   # rows multiplying mlp_in output
        "wo1e": wo1[hidden_dim:],   # rows multiplying the (repeated) embedding
        "bo1": bo1,
        "wo2": wo2, "bo2": bo2,
    }


if __name__ == "__main__":
    # Module-default channel sizes; N gives 256 rows/step with a 4-deep grid.
    B, N = 4, 256
    in_channels, embedding_size, num_classes, hidden_dim = 5, 256, 32, 16

    key = jax.random.PRNGKey(0)
    kx, kp = jax.random.split(key)
    x = jax.random.normal(kx, (B, N, in_channels), jnp.float32)
    params = _init_params(kp, in_channels, embedding_size, num_classes, hidden_dim)

    out = segmentation_head_forward(x, params)
    out = jax.block_until_ready(out)
    assert out.shape == (B, N, num_classes)

    # Tight check against the fold-matched bf16-in / f32-acc reference.
    ref_m = _reference_forward_matched(x, params)
    assert jnp.allclose(out, ref_m, atol=2e-3, rtol=2e-3), float(jnp.max(jnp.abs(out - ref_m)))

    # Loose check against the pure-f32 PyTorch-semantics (concat) reference.
    ref_f32 = _reference_forward_f32(x, params)
    assert jnp.allclose(out, ref_f32, atol=5e-2, rtol=5e-2), float(jnp.max(jnp.abs(out - ref_f32)))

    print("KERNEL_OK")
</pallas_src>

<mosaic_0001>
module attributes {stable_mosaic.version = 11 : i64} {
  func.func @_seg_head_kernel(%arg0: i32, %arg1: memref<1x256x8xbf16, #tpu.memory_space<vmem>>, %arg2: memref<1x1x16xf32, #tpu.memory_space<vmem>>, %arg3: memref<8x16xbf16, #tpu.memory_space<vmem>>, %arg4: memref<1x16xf32, #tpu.memory_space<vmem>>, %arg5: memref<16x16xbf16, #tpu.memory_space<vmem>>, %arg6: memref<16x32xbf16, #tpu.memory_space<vmem>>, %arg7: memref<1x32xf32, #tpu.memory_space<vmem>>, %arg8: memref<1x256x32xf32, #tpu.memory_space<vmem>>) attributes {dimension_semantics = [#tpu.dimension_semantics<parallel>], iteration_bounds = array<i64: 4>, scalar_prefetch = 0 : i64, scratch_operands = 0 : i64, tpu.core_type = #tpu.core_type<tc>, window_params = [{transform_indices = @transform_0, window_bounds = array<i64: 1, 256, 8>}, {transform_indices = @transform_1, window_bounds = array<i64: 1, 1, 16>}, {pipeline_mode = #tpu.pipeline_mode<synchronous>, transform_indices = @transform_2, window_bounds = array<i64: 8, 16>}, {pipeline_mode = #tpu.pipeline_mode<synchronous>, transform_indices = @transform_3, window_bounds = array<i64: 1, 16>}, {pipeline_mode = #tpu.pipeline_mode<synchronous>, transform_indices = @transform_4, window_bounds = array<i64: 16, 16>}, {pipeline_mode = #tpu.pipeline_mode<synchronous>, transform_indices = @transform_5, window_bounds = array<i64: 16, 32>}, {pipeline_mode = #tpu.pipeline_mode<synchronous>, transform_indices = @transform_6, window_bounds = array<i64: 1, 32>}, {transform_indices = @transform_7, window_bounds = array<i64: 1, 256, 32>}]} {
    %c0 = arith.constant 0 : index
    %c0_0 = arith.constant 0 : index
    %c0_1 = arith.constant 0 : index
    %0 = vector.load %arg1[%c0, %c0_0, %c0_1] : memref<1x256x8xbf16, #tpu.memory_space<vmem>>, vector<1x256x8xbf16>
    %1 = vector.shape_cast %0 : vector<1x256x8xbf16> to vector<256x8xbf16>
    %c0_2 = arith.constant 0 : index
    %c0_3 = arith.constant 0 : index
    %2 = vector.load %arg3[%c0_2, %c0_3] : memref<8x16xbf16, #tpu.memory_space<vmem>>, vector<8x16xbf16>
    %cst = arith.constant dense<0.000000e+00> : vector<256x16xf32>
    %3 = tpu.matmul %1, %2, %cst {dimension_numbers = #tpu.dot_dimension_numbers<[1], [0], [0], [1], [0, 0, 1, 1], [], []>} : vector<256x8xbf16>, vector<8x16xbf16>, vector<256x16xf32> -> vector<256x16xf32>
    %c0_4 = arith.constant 0 : index
    %c0_5 = arith.constant 0 : index
    %4 = vector.load %arg4[%c0_4, %c0_5] : memref<1x16xf32, #tpu.memory_space<vmem>>, vector<1x16xf32>
    %5 = vector.broadcast %4 : vector<1x16xf32> to vector<256x16xf32>
    %6 = arith.addf %3, %5 : vector<256x16xf32>
    %cst_6 = arith.constant 0.000000e+00 : f32
    %7 = vector.broadcast %cst_6 : f32 to vector<256x16xf32>
    %8 = arith.maximumf %6, %7 : vector<256x16xf32>
    %9 = arith.truncf %8 : vector<256x16xf32> to vector<256x16xbf16>
    %c0_7 = arith.constant 0 : index
    %c0_8 = arith.constant 0 : index
    %10 = vector.load %arg5[%c0_7, %c0_8] : memref<16x16xbf16, #tpu.memory_space<vmem>>, vector<16x16xbf16>
    %cst_9 = arith.constant dense<0.000000e+00> : vector<256x16xf32>
    %11 = tpu.matmul %9, %10, %cst_9 {dimension_numbers = #tpu.dot_dimension_numbers<[1], [0], [0], [1], [0, 0, 1, 1], [], []>} : vector<256x16xbf16>, vector<16x16xbf16>, vector<256x16xf32> -> vector<256x16xf32>
    %12 = vector.shape_cast %11 : vector<256x16xf32> to vector<1x256x16xf32>
    %c0_10 = arith.constant 0 : index
    %c0_11 = arith.constant 0 : index
    %c0_12 = arith.constant 0 : index
    %13 = vector.load %arg2[%c0_10, %c0_11, %c0_12] : memref<1x1x16xf32, #tpu.memory_space<vmem>>, vector<1x1x16xf32>
    %14 = vector.broadcast %13 : vector<1x1x16xf32> to vector<1x256x16xf32>
    %15 = arith.addf %12, %14 : vector<1x256x16xf32>
    %cst_13 = arith.constant 0.000000e+00 : f32
    %16 = vector.broadcast %cst_13 : f32 to vector<1x256x16xf32>
    %17 = arith.maximumf %15, %16 : vector<1x256x16xf32>
    %18 = arith.truncf %17 : vector<1x256x16xf32> to vector<1x256x16xbf16>
    %19 = vector.shape_cast %18 : vector<1x256x16xbf16> to vector<256x16xbf16>
    %c0_14 = arith.constant 0 : index
    %c0_15 = arith.constant 0 : index
    %20 = vector.load %arg6[%c0_14, %c0_15] : memref<16x32xbf16, #tpu.memory_space<vmem>>, vector<16x32xbf16>
    %cst_16 = arith.constant dense<0.000000e+00> : vector<256x32xf32>
    %21 = tpu.matmul %19, %20, %cst_16 {dimension_numbers = #tpu.dot_dimension_numbers<[1], [0], [0], [1], [0, 0, 1, 1], [], []>} : vector<256x16xbf16>, vector<16x32xbf16>, vector<256x32xf32> -> vector<256x32xf32>
    %c0_17 = arith.constant 0 : index
    %c0_18 = arith.constant 0 : index
    %22 = vector.load %arg7[%c0_17, %c0_18] : memref<1x32xf32, #tpu.memory_space<vmem>>, vector<1x32xf32>
    %23 = vector.broadcast %22 : vector<1x32xf32> to vector<256x32xf32>
    %24 = arith.addf %21, %23 : vector<256x32xf32>
    %25 = vector.shape_cast %24 : vector<256x32xf32> to vector<1x256x32xf32>
    %c0_19 = arith.constant 0 : index
    %c0_20 = arith.constant 0 : index
    %c0_21 = arith.constant 0 : index
    %26 = vector.load %arg8[%c0_19, %c0_20, %c0_21] : memref<1x256x32xf32, #tpu.memory_space<vmem>>, vector<1x256x32xf32>
    tpu.vector_store %arg8[%c0_19, %c0_20, %c0_21], %25 {strides = array<i32>} : memref<1x256x32xf32, #tpu.memory_space<vmem>>, vector<1x256x32xf32>,
    return
  }
  func.func @transform_0(%arg0: i32) -> (i32, i32, i32) {
    %c0_i32 = arith.constant 0 : i32
    %c0_i32_0 = arith.constant 0 : i32
    %c0_i32_1 = arith.constant 0 : i32
    return %arg0, %c0_i32, %c0_i32_0 : i32, i32, i32
  }
  func.func @transform_1(%arg0: i32) -> (i32, i32, i32) {
    %c0_i32 = arith.constant 0 : i32
    %c0_i32_0 = arith.constant 0 : i32
    %c0_i32_1 = arith.constant 0 : i32
    return %arg0, %c0_i32, %c0_i32_0 : i32, i32, i32
  }
  func.func @transform_2(%arg0: i32) -> (i32, i32) {
    %c0_i32 = arith.constant 0 : i32
    %c0_i32_0 = arith.constant 0 : i32
    %c0_i32_1 = arith.constant 0 : i32
    return %c0_i32, %c0_i32_0 : i32, i32
  }
  func.func @transform_3(%arg0: i32) -> (i32, i32) {
    %c0_i32 = arith.constant 0 : i32
    %c0_i32_0 = arith.constant 0 : i32
    %c0_i32_1 = arith.constant 0 : i32
    return %c0_i32, %c0_i32_0 : i32, i32
  }
  func.func @transform_4(%arg0: i32) -> (i32, i32) {
    %c0_i32 = arith.constant 0 : i32
    %c0_i32_0 = arith.constant 0 : i32
    %c0_i32_1 = arith.constant 0 : i32
    return %c0_i32, %c0_i32_0 : i32, i32
  }
  func.func @transform_5(%arg0: i32) -> (i32, i32) {
    %c0_i32 = arith.constant 0 : i32
    %c0_i32_0 = arith.constant 0 : i32
    %c0_i32_1 = arith.constant 0 : i32
    return %c0_i32, %c0_i32_0 : i32, i32
  }
  func.func @transform_6(%arg0: i32) -> (i32, i32) {
    %c0_i32 = arith.constant 0 : i32
    %c0_i32_0 = arith.constant 0 : i32
    %c0_i32_1 = arith.constant 0 : i32
    return %c0_i32, %c0_i32_0 : i32, i32
  }
  func.func @transform_7(%arg0: i32) -> (i32, i32, i32) {
    %c0_i32 = arith.constant 0 : i32
    %c0_i32_0 = arith.constant 0 : i32
    %c0_i32_1 = arith.constant 0 : i32
    return %arg0, %c0_i32, %c0_i32_0 : i32, i32, i32
  }
}

</mosaic_0001>

<llo_original>
// kernel: tpu_custom_call.1
$region0: #{tpu_custom_call.1}
  #allocation0 [shape = 'u32[]', space=smem, size = 0x4, offset = 0x4, fixed_abs, tag = 'smem constant byte address 0x4 - core index']
  #allocation1 [shape = 'u32[72,128]{1,0:T(1,128)}', space=vmem, size = 0x9000, scoped, tag = 'internal scratch']
  %s0 = inlined_call_operand.vmem [shape: bf16[4,256,8], index: 0, kind: input, shape index: {}]
  %s1 = inlined_call_operand.vmem [shape: f32[4,1,16], index: 1, kind: input, shape index: {}]
  %s2 = inlined_call_operand.vmem [shape: bf16[8,16], index: 2, kind: input, shape index: {}]
  %s3 = inlined_call_operand.vmem [shape: f32[1,16], index: 3, kind: input, shape index: {}]
  %s4 = inlined_call_operand.vmem [shape: bf16[16,16], index: 4, kind: input, shape index: {}]
  %s5 = inlined_call_operand.vmem [shape: bf16[16,32], index: 5, kind: input, shape index: {}]
  %s6 = inlined_call_operand.vmem [shape: f32[1,32], index: 6, kind: input, shape index: {}]
  %s7 = inlined_call_operand.vmem [shape: f32[4,256,32], index: 7, kind: output, shape index: {}]
  %s8 = sld [smem:[#allocation0]]
  $region61: #{tpu_custom_call.1} parent=0
    _
  %s10 = ssub.s32 1, %s8
  %s11 = scalar_select 0, %s10, %s8
  loop: start=0, step=1, limit=6
  $region2: #{tpu_custom_call.1} parent=0 // loop_pre_header
    _
  $region3: #{tpu_custom_call.1} parent=0 // loop_header
    %s13 = sphi 0, %s17
    %p14 = scmp.ge.s32.totalorder %s13, 6
    %s23 = sphi 0, %s25
    %s26 = sphi 0, %s23
    %s27 = sphi 0, %s26
    %s43 = sphi 0, %s27
    %s49 = sphi 0, %s51
    %s52 = sphi 0, %s49
    %s53 = sphi 0, %s52
    %s69 = sphi 0, %s53
    %s73 = sphi 0, %s73
    %s75 = sphi 0, %s73
    %s76 = sphi 0, %s75
    %s90 = sphi 0, %s76
    %s94 = sphi 0, %s94
    %s96 = sphi 0, %s94
    %s97 = sphi 0, %s96
    %s111 = sphi 0, %s97
    %s115 = sphi 0, %s115
    %s117 = sphi 0, %s115
    %s118 = sphi 0, %s117
    %s132 = sphi 0, %s118
    %s136 = sphi 0, %s136
    %s138 = sphi 0, %s136
    %s139 = sphi 0, %s138
    %s153 = sphi 0, %s139
    %s157 = sphi 0, %s157
    %s159 = sphi 0, %s157
    %s160 = sphi 0, %s159
    %s174 = sphi 0, %s160
    %s180 = sphi 0, %s182
    %s183 = sphi 0, %s180
    %s184 = sphi 0, %s183
    %s200 = sphi 0, %s184
  $region4: #{tpu_custom_call.1} parent=0 // loop_header_branch
    %16 = sbr.rel (%p14) target = $region8
  $region5: #{tpu_custom_call.1} parent=0 // loop_body
    %s18 = ssub.s32 %s13, 1
    %s19 = ssub.s32 %s13, 2
    %s20 = sadd.s32 %s13, 1
    %s21 = ssub.s32 %s13, %s20
    %p22 = scmp.eq.s32.totalorder %s21, 0
    %s24 = sadd.s32 %s23, 1
    %s25 = scalar_select %p22, %s23, %s24
    %p28 = pneg %p22
    %p29 = scmp.eq.s32.totalorder %s13, 3
    %p30 = por %p28, %p29
    %p31 = scmp.ne.s32.totalorder %s23, %s26
    %p32 = scmp.eq.s32.totalorder %s13, 0
    %p33 = por %p31, %p32
    %p34 = scmp.ne.s32.totalorder %s23, %s26
    %p35 = scmp.eq.s32.totalorder %s18, 3
    %p36 = por %p34, %p35
    %p37 = scmp.ne.s32.totalorder %s26, %s27
    %p38 = scmp.eq.s32.totalorder %s18, 0
    %p39 = por %p37, %p38
    %p40 = scmp.ne.s32.totalorder %s26, %s27
    %p41 = scmp.eq.s32.totalorder %s19, 3
    %p42 = por %p40, %p41
    %p44 = scmp.ne.s32.totalorder %s27, %s43
    %p45 = scmp.eq.s32.totalorder %s19, 0
    %p46 = por %p44, %p45
    %s47 = ssub.s32 %s13, %s20
    %p48 = scmp.eq.s32.totalorder %s47, 0
    %s50 = sadd.s32 %s49, 1
    %s51 = scalar_select %p48, %s49, %s50
    %p54 = pneg %p48
    %p55 = scmp.eq.s32.totalorder %s13, 3
    %p56 = por %p54, %p55
    %p57 = scmp.ne.s32.totalorder %s49, %s52
    %p58 = scmp.eq.s32.totalorder %s13, 0
    %p59 = por %p57, %p58
    %p60 = scmp.ne.s32.totalorder %s49, %s52
    %p61 = scmp.eq.s32.totalorder %s18, 3
    %p62 = por %p60, %p61
    %p63 = scmp.ne.s32.totalorder %s52, %s53
    %p64 = scmp.eq.s32.totalorder %s18, 0
    %p65 = por %p63, %p64
    %p66 = scmp.ne.s32.totalorder %s52, %s53
    %p67 = scmp.eq.s32.totalorder %s19, 3
    %p68 = por %p66, %p67
    %p70 = scmp.ne.s32.totalorder %s53, %s69
    %p71 = scmp.eq.s32.totalorder %s19, 0
    %p72 = por %p70, %p71
    %s74 = sadd.s32 %s73, 1
    %p77 = scmp.eq.s32.totalorder %s13, 3
    %p78 = scmp.ne.s32.totalorder %s73, %s75
    %p79 = scmp.eq.s32.totalorder %s13, 0
    %p80 = por %p78, %p79
    %p81 = scmp.ne.s32.totalorder %s73, %s75
    %p82 = scmp.eq.s32.totalorder %s18, 3
    %p83 = por %p81, %p82
    %p84 = scmp.ne.s32.totalorder %s75, %s76
    %p85 = scmp.eq.s32.totalorder %s18, 0
    %p86 = por %p84, %p85
    %p87 = scmp.ne.s32.totalorder %s75, %s76
    %p88 = scmp.eq.s32.totalorder %s19, 3
    %p89 = por %p87, %p88
    %p91 = scmp.ne.s32.totalorder %s76, %s90
    %p92 = scmp.eq.s32.totalorder %s19, 0
    %p93 = por %p91, %p92
    %s95 = sadd.s32 %s94, 1
    %p98 = scmp.eq.s32.totalorder %s13, 3
    %p99 = scmp.ne.s32.totalorder %s94, %s96
    %p100 = scmp.eq.s32.totalorder %s13, 0
    %p101 = por %p99, %p100
    %p102 = scmp.ne.s32.totalorder %s94, %s96
    %p103 = scmp.eq.s32.totalorder %s18, 3
    %p104 = por %p102, %p103
    %p105 = scmp.ne.s32.totalorder %s96, %s97
    %p106 = scmp.eq.s32.totalorder %s18, 0
    %p107 = por %p105, %p106
    %p108 = scmp.ne.s32.totalorder %s96, %s97
    %p109 = scmp.eq.s32.totalorder %s19, 3
    %p110 = por %p108, %p109
    %p112 = scmp.ne.s32.totalorder %s97, %s111
    %p113 = scmp.eq.s32.totalorder %s19, 0
    %p114 = por %p112, %p113
    %s116 = sadd.s32 %s115, 1
    %p119 = scmp.eq.s32.totalorder %s13, 3
    %p120 = scmp.ne.s32.totalorder %s115, %s117
    %p121 = scmp.eq.s32.totalorder %s13, 0
    %p122 = por %p120, %p121
    %p123 = scmp.ne.s32.totalorder %s115, %s117
    %p124 = scmp.eq.s32.totalorder %s18, 3
    %p125 = por %p123, %p124
    %p126 = scmp.ne.s32.totalorder %s117, %s118
    %p127 = scmp.eq.s32.totalorder %s18, 0
    %p128 = por %p126, %p127
    %p129 = scmp.ne.s32.totalorder %s117, %s118
    %p130 = scmp.eq.s32.totalorder %s19, 3
    %p131 = por %p129, %p130
    %p133 = scmp.ne.s32.totalorder %s118, %s132
    %p134 = scmp.eq.s32.totalorder %s19, 0
    %p135 = por %p133, %p134
    %s137 = sadd.s32 %s136, 1
    %p140 = scmp.eq.s32.totalorder %s13, 3
    %p141 = scmp.ne.s32.totalorder %s136, %s138
    %p142 = scmp.eq.s32.totalorder %s13, 0
    %p143 = por %p141, %p142
    %p144 = scmp.ne.s32.totalorder %s136, %s138
    %p145 = scmp.eq.s32.totalorder %s18, 3
    %p146 = por %p144, %p145
    %p147 = scmp.ne.s32.totalorder %s138, %s139
    %p148 = scmp.eq.s32.totalorder %s18, 0
    %p149 = por %p147, %p148
    %p150 = scmp.ne.s32.totalorder %s138, %s139
    %p151 = scmp.eq.s32.totalorder %s19, 3
    %p152 = por %p150, %p151
    %p154 = scmp.ne.s32.totalorder %s139, %s153
    %p155 = scmp.eq.s32.totalorder %s19, 0
    %p156 = por %p154, %p155
    %s158 = sadd.s32 %s157, 1
    %p161 = scmp.eq.s32.totalorder %s13, 3
    %p162 = scmp.ne.s32.totalorder %s157, %s159
    %p163 = scmp.eq.s32.totalorder %s13, 0
    %p164 = por %p162, %p163
    %p165 = scmp.ne.s32.totalorder %s157, %s159
    %p166 = scmp.eq.s32.totalorder %s18, 3
    %p167 = por %p165, %p166
    %p168 = scmp.ne.s32.totalorder %s159, %s160
    %p169 = scmp.eq.s32.totalorder %s18, 0
    %p170 = por %p168, %p169
    %p171 = scmp.ne.s32.totalorder %s159, %s160
    %p172 = scmp.eq.s32.totalorder %s19, 3
    %p173 = por %p171, %p172
    %p175 = scmp.ne.s32.totalorder %s160, %s174
    %p176 = scmp.eq.s32.totalorder %s19, 0
    %p177 = por %p175, %p176
    %s178 = ssub.s32 %s13, %s20
    %p179 = scmp.eq.s32.totalorder %s178, 0
    %s181 = sadd.s32 %s180, 1
    %s182 = scalar_select %p179, %s180, %s181
    %p185 = pneg %p179
    %p186 = scmp.eq.s32.totalorder %s13, 3
    %p187 = por %p185, %p186
    %p188 = scmp.ne.s32.totalorder %s180, %s183
    %p189 = scmp.eq.s32.totalorder %s13, 0
    %p190 = por %p188, %p189
    %p191 = scmp.ne.s32.totalorder %s180, %s183
    %p192 = scmp.eq.s32.totalorder %s18, 3
    %p193 = por %p191, %p192
    %p194 = scmp.ne.s32.totalorder %s183, %s184
    %p195 = scmp.eq.s32.totalorder %s18, 0
    %p196 = por %p194, %p195
    %p197 = scmp.ne.s32.totalorder %s183, %s184
    %p198 = scmp.eq.s32.totalorder %s19, 3
    %p199 = por %p197, %p198
    %p201 = scmp.ne.s32.totalorder %s184, %s200
    %p202 = scmp.eq.s32.totalorder %s19, 0
    %p203 = por %p201, %p202
    %p204 = scmp.le.s32.totalorder 1, %s13
    %p205 = scmp.lt.s32.totalorder %s13, 5
    %p206 = pnand %p204, %p205
    %p207 = pneg %p206
    // Predicated region
    $region9: #{tpu_custom_call.1} parent=5 // pred_check
      _
    $region10: #{tpu_custom_call.1} parent=5 // pred_check_branch
      %209 = sbr.rel (%p206) target = $region12
    $region11: #{tpu_custom_call.1} parent=5 // pred_region
      %s210 = ssub.s32 %s13, 1
      // Predicated region
      $region13: #{tpu_custom_call.1} parent=11 // pred_check
        %p211 = pneg %p86
      $region14: #{tpu_custom_call.1} parent=11 // pred_check_branch
        %213 = sbr.rel (%p211) target = $region16
      $region15: #{tpu_custom_call.1} parent=11 // pred_region
        _
      $region16: #{tpu_custom_call.1} parent=11 // pred_fallthru
        _
      // Predicated region
      $region17: #{tpu_custom_call.1} parent=11 // pred_check
        %p214 = pneg %p107
      $region18: #{tpu_custom_call.1} parent=11 // pred_check_branch
        %216 = sbr.rel (%p214) target = $region20
      $region19: #{tpu_custom_call.1} parent=11 // pred_region
        _
      $region20: #{tpu_custom_call.1} parent=11 // pred_fallthru
        _
      // Predicated region
      $region21: #{tpu_custom_call.1} parent=11 // pred_check
        %p217 = pneg %p128
      $region22: #{tpu_custom_call.1} parent=11 // pred_check_branch
        %219 = sbr.rel (%p217) target = $region24
      $region23: #{tpu_custom_call.1} parent=11 // pred_region
        _
      $region24: #{tpu_custom_call.1} parent=11 // pred_fallthru
        _
      // Predicated region
      $region25: #{tpu_custom_call.1} parent=11 // pred_check
        %p220 = pneg %p149
      $region26: #{tpu_custom_call.1} parent=11 // pred_check_branch
        %222 = sbr.rel (%p220) target = $region28
      $region27: #{tpu_custom_call.1} parent=11 // pred_region
        _
      $region28: #{tpu_custom_call.1} parent=11 // pred_fallthru
        _
      // Predicated region
      $region29: #{tpu_custom_call.1} parent=11 // pred_check
        %p223 = pneg %p170
      $region30: #{tpu_custom_call.1} parent=11 // pred_check_branch
        %225 = sbr.rel (%p223) target = $region32
      $region31: #{tpu_custom_call.1} parent=11 // pred_region
        _
      $region32: #{tpu_custom_call.1} parent=11 // pred_fallthru
        _
    $region12: #{tpu_custom_call.1} parent=5 // pred_fallthru
      _
    %p226 = scmp.lt.s32.totalorder %s13, 4
    // Predicated region
    $region33: #{tpu_custom_call.1} parent=5 // pred_check
      %p227 = pneg %p226
    $region34: #{tpu_custom_call.1} parent=5 // pred_check_branch
      %229 = sbr.rel (%p227) target = $region36
    $region35: #{tpu_custom_call.1} parent=5 // pred_region
      // Predicated region
      $region37: #{tpu_custom_call.1} parent=35 // pred_check
        %p230 = pneg %p33
      $region38: #{tpu_custom_call.1} parent=35 // pred_check_branch
        %232 = sbr.rel (%p230) target = $region40
      $region39: #{tpu_custom_call.1} parent=35 // pred_region
        %p233 = scmp.lt.s32.totalorder %s13, 3
        %s234 = scalar_select %p233, %s13, 3
        %s235 = smul.addr %s234, 32
        %s236 = smul.addr %s235, 4
        %s237 = scalar_lea.vmem %s0, %s236
      $region40: #{tpu_custom_call.1} parent=35 // pred_fallthru
        _
      // Predicated region
      $region41: #{tpu_custom_call.1} parent=35 // pred_check
        %p238 = pneg %p59
      $region42: #{tpu_custom_call.1} parent=35 // pred_check_branch
        %240 = sbr.rel (%p238) target = $region44
      $region43: #{tpu_custom_call.1} parent=35 // pred_region
        %p241 = scmp.lt.s32.totalorder %s13, 3
        %s242 = scalar_select %p241, %s13, 3
        %s243 = scalar_lea.vmem %s1, %s242
      $region44: #{tpu_custom_call.1} parent=35 // pred_fallthru
        _
    $region36: #{tpu_custom_call.1} parent=5 // pred_fallthru
      _
    %p244 = scmp.le.s32.totalorder 1, %s13
    %p245 = scmp.lt.s32.totalorder %s13, 5
    %p246 = pnand %p244, %p245
    %p247 = pneg %p246
    // Predicated region
    $region45: #{tpu_custom_call.1} parent=5 // pred_check
      _
    $region46: #{tpu_custom_call.1} parent=5 // pred_check_branch
      %249 = sbr.rel (%p246) target = $region48
    $region47: #{tpu_custom_call.1} parent=5 // pred_region
      %s250 = ssub.s32 %s13, 1
      %p251 = scmp.lt.s32.totalorder %s18, 3
      %s252 = scalar_select %p251, %s18, 3
      %s253 = smul.addr %s252, 32
      %s254 = smul.addr %s253, 4
      %s255 = scalar_lea.vmem %s0, %s254
      %p256 = pneg %p39
      %p257 = pneg %p36
      %p258 = scmp.lt.s32.totalorder %s18, 3
      %s259 = scalar_select %p258, %s18, 3
      %s260 = scalar_lea.vmem %s1, %s259
      %p261 = pneg %p65
      %p262 = pneg %p62
      %p263 = pneg %p86
      %p264 = pneg %p83
      %p265 = pneg %p107
      %p266 = pneg %p104
      %p267 = pneg %p128
      %p268 = pneg %p125
      %p269 = pneg %p149
      %p270 = pneg %p146
      %p271 = pneg %p170
      %p272 = pneg %p167
      %p273 = pneg %p196
      %p274 = pneg %p193
      %p275 = scmp.lt.s32.totalorder %s18, 3
      %s276 = scalar_select %p275, %s18, 3
      %s277 = smul.addr %s276, 32
      %s278 = smul.addr %s277, 8
      %s279 = scalar_lea.vmem %s7, %s278
      %p280 = scmp.lt.s32.totalorder %s18, 3
      %s281 = scalar_select %p280, %s18, 3
      %s282 = smul.addr %s281, 32
      %s283 = smul.addr %s282, 4
      %s284 = scalar_lea.vmem %s0, %s283
      %p285 = scmp.lt.s32.totalorder %s18, 3
      %s286 = scalar_select %p285, %s18, 3
      %s287 = scalar_lea.vmem %s1, %s286
      %p288 = scmp.lt.s32.totalorder %s18, 3
      %s289 = scalar_select %p288, %s18, 3
      %s290 = smul.addr %s289, 32
      %s291 = smul.addr %s290, 8
      %s292 = scalar_lea.vmem %s7, %s291
      %v294 = vld [vmem:[%s284] sm:$0xf]
      %v295 = vld [vmem:[%s284 + $0x4] sm:$0xf]
      %v296 = vld [vmem:[%s284 + $0x8] sm:$0xf]
      %v297 = vld [vmem:[%s284 + $0xc] sm:$0xf]
      %v298 = vld [vmem:[%s284 + $0x10] sm:$0xf]
      %v299 = vld [vmem:[%s284 + $0x14] sm:$0xf]
      %v300 = vld [vmem:[%s284 + $0x18] sm:$0xf]
      %v301 = vld [vmem:[%s284 + $0x1c] sm:$0xf]
      %v302 = vld [vmem:[%s284 + $0x20] sm:$0xf]
      %v303 = vld [vmem:[%s284 + $0x24] sm:$0xf]
      %v304 = vld [vmem:[%s284 + $0x28] sm:$0xf]
      %v305 = vld [vmem:[%s284 + $0x2c] sm:$0xf]
      %v306 = vld [vmem:[%s284 + $0x30] sm:$0xf]
      %v307 = vld [vmem:[%s284 + $0x34] sm:$0xf]
      %v308 = vld [vmem:[%s284 + $0x38] sm:$0xf]
      %v309 = vld [vmem:[%s284 + $0x3c] sm:$0xf]
      %v310 = vld [vmem:[%s284 + $0x40] sm:$0xf]
      %v311 = vld [vmem:[%s284 + $0x44] sm:$0xf]
      %v312 = vld [vmem:[%s284 + $0x48] sm:$0xf]
      %v313 = vld [vmem:[%s284 + $0x4c] sm:$0xf]
      %v314 = vld [vmem:[%s284 + $0x50] sm:$0xf]
      %v315 = vld [vmem:[%s284 + $0x54] sm:$0xf]
      %v316 = vld [vmem:[%s284 + $0x58] sm:$0xf]
      %v317 = vld [vmem:[%s284 + $0x5c] sm:$0xf]
      %v318 = vld [vmem:[%s284 + $0x60] sm:$0xf]
      %v319 = vld [vmem:[%s284 + $0x64] sm:$0xf]
      %v320 = vld [vmem:[%s284 + $0x68] sm:$0xf]
      %v321 = vld [vmem:[%s284 + $0x6c] sm:$0xf]
      %v322 = vld [vmem:[%s284 + $0x70] sm:$0xf]
      %v323 = vld [vmem:[%s284 + $0x74] sm:$0xf]
      %v324 = vld [vmem:[%s284 + $0x78] sm:$0xf]
      %v325 = vld [vmem:[%s284 + $0x7c] sm:$0xf]
      %v326 = vld [vmem:[%s2] sm:$0xf]
      %v327 = vld [vmem:[%s3] sm:$0x1]
      %v329 = vperm.slane %v327, 0
      %v363 = vunpack.c.l.b16 %v294
      %v364 = vunpack.c.l.b16 %v295
      %v365 = vunpack.c.l.b16 %v296
      %v366 = vunpack.c.l.b16 %v297
      %v367 = vunpack.c.l.b16 %v298
      %v368 = vunpack.c.l.b16 %v299
      %v369 = vunpack.c.l.b16 %v300
      %v370 = vunpack.c.l.b16 %v301
      %v371 = vunpack.c.l.b16 %v302
      %v372 = vunpack.c.l.b16 %v303
      %v373 = vunpack.c.l.b16 %v304
      %v374 = vunpack.c.l.b16 %v305
      %v375 = vunpack.c.l.b16 %v306
      %v376 = vunpack.c.l.b16 %v307
      %v377 = vunpack.c.l.b16 %v308
      %v378 = vunpack.c.l.b16 %v309
      %v379 = vunpack.c.l.b16 %v310
      %v380 = vunpack.c.l.b16 %v311
      %v381 = vunpack.c.l.b16 %v312
      %v382 = vunpack.c.l.b16 %v313
      %v383 = vunpack.c.l.b16 %v314
      %v384 = vunpack.c.l.b16 %v315
      %v385 = vunpack.c.l.b16 %v316
      %v386 = vunpack.c.l.b16 %v317
      %v387 = vunpack.c.l.b16 %v318
      %v388 = vunpack.c.l.b16 %v319
      %v389 = vunpack.c.l.b16 %v320
      %v390 = vunpack.c.l.b16 %v321
      %v391 = vunpack.c.l.b16 %v322
      %v392 = vunpack.c.l.b16 %v323
      %v393 = vunpack.c.l.b16 %v324
      %v394 = vunpack.c.l.b16 %v325
      %v395 = vpack.c.b16 %v364, %v363
      %v396 = vpack.c.b16 %v366, %v365
      %v397 = vpack.c.b16 %v368, %v367
      %v398 = vpack.c.b16 %v370, %v369
      %v399 = vpack.c.b16 %v372, %v371
      %v400 = vpack.c.b16 %v374, %v373
      %v401 = vpack.c.b16 %v376, %v375
      %v402 = vpack.c.b16 %v378, %v377
      %v403 = vpack.c.b16 %v380, %v379
      %v404 = vpack.c.b16 %v382, %v381
      %v405 = vpack.c.b16 %v384, %v383
      %v406 = vpack.c.b16 %v386, %v385
      %v407 = vpack.c.b16 %v388, %v387
      %v408 = vpack.c.b16 %v390, %v389
      %v409 = vpack.c.b16 %v392, %v391
      %v410 = vpack.c.b16 %v394, %v393
      %vm411 = vcmask 64512
      %v413 = vsel %vm411, %v395, 0
      %v416 = vsel %vm411, %v396, 0
      %v419 = vsel %vm411, %v397, 0
      %v422 = vsel %vm411, %v398, 0
      %v425 = vsel %vm411, %v399, 0
      %v428 = vsel %vm411, %v400, 0
      %v431 = vsel %vm411, %v401, 0
      %v434 = vsel %vm411, %v402, 0
      %v437 = vsel %vm411, %v403, 0
      %v440 = vsel %vm411, %v404, 0
      %v443 = vsel %vm411, %v405, 0
      %v446 = vsel %vm411, %v406, 0
      %v449 = vsel %vm411, %v407, 0
      %v452 = vsel %vm411, %v408, 0
      %v455 = vsel %vm411, %v409, 0
      %v458 = vsel %vm411, %v410, 0
      %vm460 = vcmask 1043456
      %v462 = vsel %vm460, %v326, 0
      %464 = vmatpush.bf16.msra.mxu0 0
      %465 = vmatpush.bf16.msra.mxu0 0
      %466 = vmatpush.bf16.msra.mxu0 0
      %467 = vmatpush.bf16.msra.mxu0 0
      %468 = vmatpush.bf16.msra.mxu0 0
      %469 = vmatpush.bf16.msra.mxu0 0
      %470 = vmatpush.bf16.msra.mxu0 0
      %471 = vmatpush.bf16.msra.mxu0 %v462
      %472 = vmatmul.bf16.gmra.mxu0 %v413
      %v473 = vpop.f32.mrf.mxu0
      %v474 = vadd.f32 %v329, %v473
      %v475 = vpop.f32.mrf.mxu0
      %v476 = vadd.f32 %v329, %v475
      %477 = vmatmul.bf16.gmra.mxu0 %v416
      %v478 = vpop.f32.mrf.mxu0
      %v479 = vadd.f32 %v329, %v478
      %v480 = vpop.f32.mrf.mxu0
      %v481 = vadd.f32 %v329, %v480
      %482 = vmatmul.bf16.gmra.mxu0 %v419
      %v483 = vpop.f32.mrf.mxu0
      %v484 = vadd.f32 %v329, %v483
      %v485 = vpop.f32.mrf.mxu0
      %v486 = vadd.f32 %v329, %v485
      %487 = vmatmul.bf16.gmra.mxu0 %v422
      %v488 = vpop.f32.mrf.mxu0
      %v489 = vadd.f32 %v329, %v488
      %v490 = vpop.f32.mrf.mxu0
      %v491 = vadd.f32 %v329, %v490
      %492 = vmatmul.bf16.gmra.mxu0 %v425
      %v493 = vpop.f32.mrf.mxu0
      %v494 = vadd.f32 %v329, %v493
      %v495 = vpop.f32.mrf.mxu0
      %v496 = vadd.f32 %v329, %v495
      %497 = vmatmul.bf16.gmra.mxu0 %v428
      %v498 = vpop.f32.mrf.mxu0
      %v499 = vadd.f32 %v329, %v498
      %v500 = vpop.f32.mrf.mxu0
      %v501 = vadd.f32 %v329, %v500
      %502 = vmatmul.bf16.gmra.mxu0 %v431
      %v503 = vpop.f32.mrf.mxu0
      %v504 = vadd.f32 %v329, %v503
      %v505 = vpop.f32.mrf.mxu0
      %v506 = vadd.f32 %v329, %v505
      %507 = vmatmul.bf16.gmra.mxu0 %v434
      %v508 = vpop.f32.mrf.mxu0
      %v509 = vadd.f32 %v329, %v508
      %v510 = vpop.f32.mrf.mxu0
      %v511 = vadd.f32 %v329, %v510
      %512 = vmatmul.bf16.gmra.mxu0 %v437
      %v513 = vpop.f32.mrf.mxu0
      %v514 = vadd.f32 %v329, %v513
      %v515 = vpop.f32.mrf.mxu0
      %v516 = vadd.f32 %v329, %v515
      %517 = vmatmul.bf16.gmra.mxu0 %v440
      %v518 = vpop.f32.mrf.mxu0
      %v519 = vadd.f32 %v329, %v518
      %v520 = vpop.f32.mrf.mxu0
      %v521 = vadd.f32 %v329, %v520
      %522 = vmatmul.bf16.gmra.mxu0 %v443
      %v523 = vpop.f32.mrf.mxu0
      %v524 = vadd.f32 %v329, %v523
      %v525 = vpop.f32.mrf.mxu0
      %v526 = vadd.f32 %v329, %v525
      %527 = vmatmul.bf16.gmra.mxu0 %v446
      %v528 = vpop.f32.mrf.mxu0
      %v529 = vadd.f32 %v329, %v528
      %v530 = vpop.f32.mrf.mxu0
      %v531 = vadd.f32 %v329, %v530
      %532 = vmatmul.bf16.gmra.mxu0 %v449
      %v533 = vpop.f32.mrf.mxu0
      %v534 = vadd.f32 %v329, %v533
      %v535 = vpop.f32.mrf.mxu0
      %v536 = vadd.f32 %v329, %v535
      %537 = vmatmul.bf16.gmra.mxu0 %v452
      %v538 = vpop.f32.mrf.mxu0
      %v539 = vadd.f32 %v329, %v538
      %v540 = vpop.f32.mrf.mxu0
      %v541 = vadd.f32 %v329, %v540
      %542 = vmatmul.bf16.gmra.mxu0 %v455
      %v543 = vpop.f32.mrf.mxu0
      %v544 = vadd.f32 %v329, %v543
      %v545 = vpop.f32.mrf.mxu0
      %v546 = vadd.f32 %v329, %v545
      %547 = vmatmul.bf16.gmra.mxu0 %v458
      %v548 = vpop.f32.mrf.mxu0
      %v549 = vadd.f32 %v329, %v548
      %v550 = vpop.f32.mrf.mxu0
      %v551 = vadd.f32 %v329, %v550
      %552 = vdwg.mxu0
      %v553 = vmax.f32 %v474, 0.0
      %v554 = vmax.f32 %v476, 0.0
      %v555 = vmax.f32 %v479, 0.0
      %v556 = vmax.f32 %v481, 0.0
      %v557 = vmax.f32 %v484, 0.0
      %v558 = vmax.f32 %v486, 0.0
      %v559 = vmax.f32 %v489, 0.0
      %v560 = vmax.f32 %v491, 0.0
      %v561 = vmax.f32 %v494, 0.0
      %v562 = vmax.f32 %v496, 0.0
      %v563 = vmax.f32 %v499, 0.0
      %v564 = vmax.f32 %v501, 0.0
      %v565 = vmax.f32 %v504, 0.0
      %v566 = vmax.f32 %v506, 0.0
      %v567 = vmax.f32 %v509, 0.0
      %v568 = vmax.f32 %v511, 0.0
      %v569 = vmax.f32 %v514, 0.0
      %v570 = vmax.f32 %v516, 0.0
      %v571 = vmax.f32 %v519, 0.0
      %v572 = vmax.f32 %v521, 0.0
      %v573 = vmax.f32 %v524, 0.0
      %v574 = vmax.f32 %v526, 0.0
      %v575 = vmax.f32 %v529, 0.0
      %v576 = vmax.f32 %v531, 0.0
      %v577 = vmax.f32 %v534, 0.0
      %v578 = vmax.f32 %v536, 0.0
      %v579 = vmax.f32 %v539, 0.0
      %v580 = vmax.f32 %v541, 0.0
      %v581 = vmax.f32 %v544, 0.0
      %v582 = vmax.f32 %v546, 0.0
      %v583 = vmax.f32 %v549, 0.0
      %v584 = vmax.f32 %v551, 0.0
      %v585 = vpack.c.bf16 %v554, %v553
      %v586 = vpack.c.bf16 %v556, %v555
      %v587 = vpack.c.bf16 %v558, %v557
      %v588 = vpack.c.bf16 %v560, %v559
      %v589 = vpack.c.bf16 %v562, %v561
      %v590 = vpack.c.bf16 %v564, %v563
      %v591 = vpack.c.bf16 %v566, %v565
      %v592 = vpack.c.bf16 %v568, %v567
      %v593 = vpack.c.bf16 %v570, %v569
      %v594 = vpack.c.bf16 %v572, %v571
      %v595 = vpack.c.bf16 %v574, %v573
      %v596 = vpack.c.bf16 %v576, %v575
      %v597 = vpack.c.bf16 %v578, %v577
      %v598 = vpack.c.bf16 %v580, %v579
      %v599 = vpack.c.bf16 %v582, %v581
      %v600 = vpack.c.bf16 %v584, %v583
      %v601 = vld [vmem:[%s4] sm:$0xf]
      %v602 = vld [vmem:[%s4 + $0x4] sm:$0xf]
      %v605 = vunpack.c.l.b16 %v601
      %v606 = vunpack.c.l.b16 %v602
      %v607 = vpack.c.b16 %v606, %v605
      %vm609 = vcmask 130048
      %v611 = vsel %vm609, %v585, 0
      %v614 = vsel %vm609, %v586, 0
      %v617 = vsel %vm609, %v587, 0
      %v620 = vsel %vm609, %v588, 0
      %v623 = vsel %vm609, %v589, 0
      %v626 = vsel %vm609, %v590, 0
      %v629 = vsel %vm609, %v591, 0
      %v632 = vsel %vm609, %v592, 0
      %v635 = vsel %vm609, %v593, 0
      %v638 = vsel %vm609, %v594, 0
      %v641 = vsel %vm609, %v595, 0
      %v644 = vsel %vm609, %v596, 0
      %v647 = vsel %vm609, %v597, 0
      %v650 = vsel %vm609, %v598, 0
      %v653 = vsel %vm609, %v599, 0
      %v656 = vsel %vm609, %v600, 0
      %658 = vmatpush.bf16.msra.mxu0 0
      %659 = vmatpush.bf16.msra.mxu0 0
      %660 = vmatpush.bf16.msra.mxu0 0
      %661 = vmatpush.bf16.msra.mxu0 0
      %662 = vmatpush.bf16.msra.mxu0 0
      %663 = vmatpush.bf16.msra.mxu0 0
      %664 = vmatpush.bf16.msra.mxu0 0
      %665 = vmatpush.bf16.msra.mxu0 %v607
      %666 = vmatmul.bf16.gmra.mxu0 %v611
      %v667 = vpop.f32.mrf.mxu0
      %v668 = vadd.f32 0.0, %v667
      %v669 = vpop.f32.mrf.mxu0
      %v670 = vadd.f32 0.0, %v669
      %671 = vmatmul.bf16.gmra.mxu0 %v614
      %v672 = vpop.f32.mrf.mxu0
      %v673 = vadd.f32 0.0, %v672
      %v674 = vpop.f32.mrf.mxu0
      %v675 = vadd.f32 0.0, %v674
      %676 = vmatmul.bf16.gmra.mxu0 %v617
      %v677 = vpop.f32.mrf.mxu0
      %v678 = vadd.f32 0.0, %v677
      %v679 = vpop.f32.mrf.mxu0
      %v680 = vadd.f32 0.0, %v679
      %681 = vmatmul.bf16.gmra.mxu0 %v620
      %v682 = vpop.f32.mrf.mxu0
      %v683 = vadd.f32 0.0, %v682
      %v684 = vpop.f32.mrf.mxu0
      %v685 = vadd.f32 0.0, %v684
      %686 = vmatmul.bf16.gmra.mxu0 %v623
      %v687 = vpop.f32.mrf.mxu0
      %v688 = vadd.f32 0.0, %v687
      %v689 = vpop.f32.mrf.mxu0
      %v690 = vadd.f32 0.0, %v689
      %691 = vmatmul.bf16.gmra.mxu0 %v626
      %v692 = vpop.f32.mrf.mxu0
      %v693 = vadd.f32 0.0, %v692
      %v694 = vpop.f32.mrf.mxu0
      %v695 = vadd.f32 0.0, %v694
      %696 = vmatmul.bf16.gmra.mxu0 %v629
      %v697 = vpop.f32.mrf.mxu0
      %v698 = vadd.f32 0.0, %v697
      %v699 = vpop.f32.mrf.mxu0
      %v700 = vadd.f32 0.0, %v699
      %701 = vmatmul.bf16.gmra.mxu0 %v632
      %v702 = vpop.f32.mrf.mxu0
      %v703 = vadd.f32 0.0, %v702
      %v704 = vpop.f32.mrf.mxu0
      %v705 = vadd.f32 0.0, %v704
      %706 = vmatmul.bf16.gmra.mxu0 %v635
      %v707 = vpop.f32.mrf.mxu0
      %v708 = vadd.f32 0.0, %v707
      %v709 = vpop.f32.mrf.mxu0
      %v710 = vadd.f32 0.0, %v709
      %711 = vmatmul.bf16.gmra.mxu0 %v638
      %v712 = vpop.f32.mrf.mxu0
      %v713 = vadd.f32 0.0, %v712
      %v714 = vpop.f32.mrf.mxu0
      %v715 = vadd.f32 0.0, %v714
      %716 = vmatmul.bf16.gmra.mxu0 %v641
      %v717 = vpop.f32.mrf.mxu0
      %v718 = vadd.f32 0.0, %v717
      %v719 = vpop.f32.mrf.mxu0
      %v720 = vadd.f32 0.0, %v719
      %721 = vmatmul.bf16.gmra.mxu0 %v644
      %v722 = vpop.f32.mrf.mxu0
      %v723 = vadd.f32 0.0, %v722
      %v724 = vpop.f32.mrf.mxu0
      %v725 = vadd.f32 0.0, %v724
      %726 = vmatmul.bf16.gmra.mxu0 %v647
      %v727 = vpop.f32.mrf.mxu0
      %v728 = vadd.f32 0.0, %v727
      %v729 = vpop.f32.mrf.mxu0
      %v730 = vadd.f32 0.0, %v729
      %731 = vmatmul.bf16.gmra.mxu0 %v650
      %v732 = vpop.f32.mrf.mxu0
      %v733 = vadd.f32 0.0, %v732
      %v734 = vpop.f32.mrf.mxu0
      %v735 = vadd.f32 0.0, %v734
      %736 = vmatmul.bf16.gmra.mxu0 %v653
      %v737 = vpop.f32.mrf.mxu0
      %v738 = vadd.f32 0.0, %v737
      %v739 = vpop.f32.mrf.mxu0
      %v740 = vadd.f32 0.0, %v739
      %741 = vmatmul.bf16.gmra.mxu0 %v656
      %v742 = vpop.f32.mrf.mxu0
      %v743 = vadd.f32 0.0, %v742
      %v744 = vpop.f32.mrf.mxu0
      %v745 = vadd.f32 0.0, %v744
      %746 = vdwg.mxu0
      %v747 = vld [vmem:[%s287] sm:$0x1]
      %v749 = vperm.slane %v747, 0
      %v751 = vadd.f32 %v668, %v749
      %v752 = vadd.f32 %v670, %v749
      %v753 = vadd.f32 %v673, %v749
      %v754 = vadd.f32 %v675, %v749
      %v755 = vadd.f32 %v678, %v749
      %v756 = vadd.f32 %v680, %v749
      %v757 = vadd.f32 %v683, %v749
      %v758 = vadd.f32 %v685, %v749
      %v759 = vadd.f32 %v688, %v749
      %v760 = vadd.f32 %v690, %v749
      %v761 = vadd.f32 %v693, %v749
      %v762 = vadd.f32 %v695, %v749
      %v763 = vadd.f32 %v698, %v749
      %v764 = vadd.f32 %v700, %v749
      %v765 = vadd.f32 %v703, %v749
      %v766 = vadd.f32 %v705, %v749
      %v767 = vadd.f32 %v708, %v749
      %v768 = vadd.f32 %v710, %v749
      %v769 = vadd.f32 %v713, %v749
      %v770 = vadd.f32 %v715, %v749
      %v771 = vadd.f32 %v718, %v749
      %v772 = vadd.f32 %v720, %v749
      %v773 = vadd.f32 %v723, %v749
      %v774 = vadd.f32 %v725, %v749
      %v775 = vadd.f32 %v728, %v749
      %v776 = vadd.f32 %v730, %v749
      %v777 = vadd.f32 %v733, %v749
      %v778 = vadd.f32 %v735, %v749
      %v779 = vadd.f32 %v738, %v749
      %v780 = vadd.f32 %v740, %v749
      %v781 = vadd.f32 %v743, %v749
      %v782 = vadd.f32 %v745, %v749
      %v783 = vmax.f32 %v751, 0.0
      %v784 = vmax.f32 %v752, 0.0
      %v785 = vmax.f32 %v753, 0.0
      %v786 = vmax.f32 %v754, 0.0
      %v787 = vmax.f32 %v755, 0.0
      %v788 = vmax.f32 %v756, 0.0
      %v789 = vmax.f32 %v757, 0.0
      %v790 = vmax.f32 %v758, 0.0
      %v791 = vmax.f32 %v759, 0.0
      %v792 = vmax.f32 %v760, 0.0
      %v793 = vmax.f32 %v761, 0.0
      %v794 = vmax.f32 %v762, 0.0
      %v795 = vmax.f32 %v763, 0.0
      %v796 = vmax.f32 %v764, 0.0
      %v797 = vmax.f32 %v765, 0.0
      %v798 = vmax.f32 %v766, 0.0
      %v799 = vmax.f32 %v767, 0.0
      %v800 = vmax.f32 %v768, 0.0
      %v801 = vmax.f32 %v769, 0.0
      %v802 = vmax.f32 %v770, 0.0
      %v803 = vmax.f32 %v771, 0.0
      %v804 = vmax.f32 %v772, 0.0
      %v805 = vmax.f32 %v773, 0.0
      %v806 = vmax.f32 %v774, 0.0
      %v807 = vmax.f32 %v775, 0.0
      %v808 = vmax.f32 %v776, 0.0
      %v809 = vmax.f32 %v777, 0.0
      %v810 = vmax.f32 %v778, 0.0
      %v811 = vmax.f32 %v779, 0.0
      %v812 = vmax.f32 %v780, 0.0
      %v813 = vmax.f32 %v781, 0.0
      %v814 = vmax.f32 %v782, 0.0
      %v815 = vpack.c.bf16 %v783, %v783
      %v816 = vpack.c.bf16 %v784, %v784
      %v817 = vpack.c.bf16 %v785, %v785
      %v818 = vpack.c.bf16 %v786, %v786
      %v819 = vpack.c.bf16 %v787, %v787
      %v820 = vpack.c.bf16 %v788, %v788
      %v821 = vpack.c.bf16 %v789, %v789
      %v822 = vpack.c.bf16 %v790, %v790
      %v823 = vpack.c.bf16 %v791, %v791
      %v824 = vpack.c.bf16 %v792, %v792
      %v825 = vpack.c.bf16 %v793, %v793
      %v826 = vpack.c.bf16 %v794, %v794
      %v827 = vpack.c.bf16 %v795, %v795
      %v828 = vpack.c.bf16 %v796, %v796
      %v829 = vpack.c.bf16 %v797, %v797
      %v830 = vpack.c.bf16 %v798, %v798
      %v831 = vpack.c.bf16 %v799, %v799
      %v832 = vpack.c.bf16 %v800, %v800
      %v833 = vpack.c.bf16 %v801, %v801
      %v834 = vpack.c.bf16 %v802, %v802
      %v835 = vpack.c.bf16 %v803, %v803
      %v836 = vpack.c.bf16 %v804, %v804
      %v837 = vpack.c.bf16 %v805, %v805
      %v838 = vpack.c.bf16 %v806, %v806
      %v839 = vpack.c.bf16 %v807, %v807
      %v840 = vpack.c.bf16 %v808, %v808
      %v841 = vpack.c.bf16 %v809, %v809
      %v842 = vpack.c.bf16 %v810, %v810
      %v843 = vpack.c.bf16 %v811, %v811
      %v844 = vpack.c.bf16 %v812, %v812
      %v845 = vpack.c.bf16 %v813, %v813
      %v846 = vpack.c.bf16 %v814, %v814
      %v847 = vld [vmem:[%s5] sm:$0xf]
      %v848 = vld [vmem:[%s5 + $0x4] sm:$0xf]
      %v849 = vld [vmem:[%s6] sm:$0x1]
      %v851 = vperm.slane %v849, 0
      %v885 = vunpack.c.l.b16 %v815
      %v886 = vunpack.c.l.b16 %v816
      %v887 = vunpack.c.l.b16 %v817
      %v888 = vunpack.c.l.b16 %v818
      %v889 = vunpack.c.l.b16 %v819
      %v890 = vunpack.c.l.b16 %v820
      %v891 = vunpack.c.l.b16 %v821
      %v892 = vunpack.c.l.b16 %v822
      %v893 = vunpack.c.l.b16 %v823
      %v894 = vunpack.c.l.b16 %v824
      %v895 = vunpack.c.l.b16 %v825
      %v896 = vunpack.c.l.b16 %v826
      %v897 = vunpack.c.l.b16 %v827
      %v898 = vunpack.c.l.b16 %v828
      %v899 = vunpack.c.l.b16 %v829
      %v900 = vunpack.c.l.b16 %v830
      %v901 = vunpack.c.l.b16 %v831
      %v902 = vunpack.c.l.b16 %v832
      %v903 = vunpack.c.l.b16 %v833
      %v904 = vunpack.c.l.b16 %v834
      %v905 = vunpack.c.l.b16 %v835
      %v906 = vunpack.c.l.b16 %v836
      %v907 = vunpack.c.l.b16 %v837
      %v908 = vunpack.c.l.b16 %v838
      %v909 = vunpack.c.l.b16 %v839
      %v910 = vunpack.c.l.b16 %v840
      %v911 = vunpack.c.l.b16 %v841
      %v912 = vunpack.c.l.b16 %v842
      %v913 = vunpack.c.l.b16 %v843
      %v914 = vunpack.c.l.b16 %v844
      %v915 = vunpack.c.l.b16 %v845
      %v916 = vunpack.c.l.b16 %v846
      %v917 = vpack.c.b16 %v886, %v885
      %v918 = vpack.c.b16 %v888, %v887
      %v919 = vpack.c.b16 %v890, %v889
      %v920 = vpack.c.b16 %v892, %v891
      %v921 = vpack.c.b16 %v894, %v893
      %v922 = vpack.c.b16 %v896, %v895
      %v923 = vpack.c.b16 %v898, %v897
      %v924 = vpack.c.b16 %v900, %v899
      %v925 = vpack.c.b16 %v902, %v901
      %v926 = vpack.c.b16 %v904, %v903
      %v927 = vpack.c.b16 %v906, %v905
      %v928 = vpack.c.b16 %v908, %v907
      %v929 = vpack.c.b16 %v910, %v909
      %v930 = vpack.c.b16 %v912, %v911
      %v931 = vpack.c.b16 %v914, %v913
      %v932 = vpack.c.b16 %v916, %v915
      %v935 = vunpack.c.l.b16 %v847
      %v936 = vunpack.c.l.b16 %v848
      %v937 = vpack.c.b16 %v936, %v935
      %v940 = vsel %vm609, %v917, 0
      %v943 = vsel %vm609, %v918, 0
      %v946 = vsel %vm609, %v919, 0
      %v949 = vsel %vm609, %v920, 0
      %v952 = vsel %vm609, %v921, 0
      %v955 = vsel %vm609, %v922, 0
      %v958 = vsel %vm609, %v923, 0
      %v961 = vsel %vm609, %v924, 0
      %v964 = vsel %vm609, %v925, 0
      %v967 = vsel %vm609, %v926, 0
      %v970 = vsel %vm609, %v927, 0
      %v973 = vsel %vm609, %v928, 0
      %v976 = vsel %vm609, %v929, 0
      %v979 = vsel %vm609, %v930, 0
      %v982 = vsel %vm609, %v931, 0
      %v985 = vsel %vm609, %v932, 0
      %987 = vmatpush.bf16.msra.mxu0 0
      %988 = vmatpush.bf16.msra.mxu0 0
      %989 = vmatpush.bf16.msra.mxu0 0
      %990 = vmatpush.bf16.msra.mxu0 0
      %991 = vmatpush.bf16.msra.mxu0 0
      %992 = vmatpush.bf16.msra.mxu0 0
      %993 = vmatpush.bf16.msra.mxu0 0
      %994 = vmatpush.bf16.msra.mxu0 %v937
      %995 = vmatmul.bf16.gmra.mxu0 %v940
      %v996 = vpop.f32.mrf.mxu0
      %v997 = vadd.f32 %v851, %v996
      %v998 = vpop.f32.mrf.mxu0
      %v999 = vadd.f32 %v851, %v998
      %1000 = vmatmul.bf16.gmra.mxu0 %v943
      %v1001 = vpop.f32.mrf.mxu0
      %v1002 = vadd.f32 %v851, %v1001
      %v1003 = vpop.f32.mrf.mxu0
      %v1004 = vadd.f32 %v851, %v1003
      %1005 = vmatmul.bf16.gmra.mxu0 %v946
      %v1006 = vpop.f32.mrf.mxu0
      %v1007 = vadd.f32 %v851, %v1006
      %v1008 = vpop.f32.mrf.mxu0
      %v1009 = vadd.f32 %v851, %v1008
      %1010 = vmatmul.bf16.gmra.mxu0 %v949
      %v1011 = vpop.f32.mrf.mxu0
      %v1012 = vadd.f32 %v851, %v1011
      %v1013 = vpop.f32.mrf.mxu0
      %v1014 = vadd.f32 %v851, %v1013
      %1015 = vmatmul.bf16.gmra.mxu0 %v952
      %v1016 = vpop.f32.mrf.mxu0
      %v1017 = vadd.f32 %v851, %v1016
      %v1018 = vpop.f32.mrf.mxu0
      %v1019 = vadd.f32 %v851, %v1018
      %1020 = vmatmul.bf16.gmra.mxu0 %v955
      %v1021 = vpop.f32.mrf.mxu0
      %v1022 = vadd.f32 %v851, %v1021
      %v1023 = vpop.f32.mrf.mxu0
      %v1024 = vadd.f32 %v851, %v1023
      %1025 = vmatmul.bf16.gmra.mxu0 %v958
      %v1026 = vpop.f32.mrf.mxu0
      %v1027 = vadd.f32 %v851, %v1026
      %v1028 = vpop.f32.mrf.mxu0
      %v1029 = vadd.f32 %v851, %v1028
      %1030 = vmatmul.bf16.gmra.mxu0 %v961
      %v1031 = vpop.f32.mrf.mxu0
      %v1032 = vadd.f32 %v851, %v1031
      %v1033 = vpop.f32.mrf.mxu0
      %v1034 = vadd.f32 %v851, %v1033
      %1035 = vmatmul.bf16.gmra.mxu0 %v964
      %v1036 = vpop.f32.mrf.mxu0
      %v1037 = vadd.f32 %v851, %v1036
      %v1038 = vpop.f32.mrf.mxu0
      %v1039 = vadd.f32 %v851, %v1038
      %1040 = vmatmul.bf16.gmra.mxu0 %v967
      %v1041 = vpop.f32.mrf.mxu0
      %v1042 = vadd.f32 %v851, %v1041
      %v1043 = vpop.f32.mrf.mxu0
      %v1044 = vadd.f32 %v851, %v1043
      %1045 = vmatmul.bf16.gmra.mxu0 %v970
      %v1046 = vpop.f32.mrf.mxu0
      %v1047 = vadd.f32 %v851, %v1046
      %v1048 = vpop.f32.mrf.mxu0
      %v1049 = vadd.f32 %v851, %v1048
      %1050 = vmatmul.bf16.gmra.mxu0 %v973
      %v1051 = vpop.f32.mrf.mxu0
      %v1052 = vadd.f32 %v851, %v1051
      %v1053 = vpop.f32.mrf.mxu0
      %v1054 = vadd.f32 %v851, %v1053
      %1055 = vmatmul.bf16.gmra.mxu0 %v976
      %v1056 = vpop.f32.mrf.mxu0
      %v1057 = vadd.f32 %v851, %v1056
      %v1058 = vpop.f32.mrf.mxu0
      %v1059 = vadd.f32 %v851, %v1058
      %1060 = vmatmul.bf16.gmra.mxu0 %v979
      %v1061 = vpop.f32.mrf.mxu0
      %v1062 = vadd.f32 %v851, %v1061
      %v1063 = vpop.f32.mrf.mxu0
      %v1064 = vadd.f32 %v851, %v1063
      %1065 = vmatmul.bf16.gmra.mxu0 %v982
      %v1066 = vpop.f32.mrf.mxu0
      %v1067 = vadd.f32 %v851, %v1066
      %v1068 = vpop.f32.mrf.mxu0
      %v1069 = vadd.f32 %v851, %v1068
      %1070 = vmatmul.bf16.gmra.mxu0 %v985
      %v1071 = vpop.f32.mrf.mxu0
      %v1072 = vadd.f32 %v851, %v1071
      %v1073 = vpop.f32.mrf.mxu0
      %v1074 = vadd.f32 %v851, %v1073
      %1075 = vdwg.mxu0
      %vm1076 = vcmask 261120
      %1077 = vst.msk [vmem:[%s292] sm:$0xff] %vm1076, %v997
      %1078 = vst.msk [vmem:[%s292 + $0x8] sm:$0xff] %vm1076, %v999
      %1079 = vst.msk [vmem:[%s292 + $0x10] sm:$0xff] %vm1076, %v1002
      %1080 = vst.msk [vmem:[%s292 + $0x18] sm:$0xff] %vm1076, %v1004
      %1081 = vst.msk [vmem:[%s292 + $0x20] sm:$0xff] %vm1076, %v1007
      %1082 = vst.msk [vmem:[%s292 + $0x28] sm:$0xff] %vm1076, %v1009
      %1083 = vst.msk [vmem:[%s292 + $0x30] sm:$0xff] %vm1076, %v1012
      %1084 = vst.msk [vmem:[%s292 + $0x38] sm:$0xff] %vm1076, %v1014
      %1085 = vst.msk [vmem:[%s292 + $0x40] sm:$0xff] %vm1076, %v1017
      %1086 = vst.msk [vmem:[%s292 + $0x48] sm:$0xff] %vm1076, %v1019
      %1087 = vst.msk [vmem:[%s292 + $0x50] sm:$0xff] %vm1076, %v1022
      %1088 = vst.msk [vmem:[%s292 + $0x58] sm:$0xff] %vm1076, %v1024
      %1089 = vst.msk [vmem:[%s292 + $0x60] sm:$0xff] %vm1076, %v1027
      %1090 = vst.msk [vmem:[%s292 + $0x68] sm:$0xff] %vm1076, %v1029
      %1091 = vst.msk [vmem:[%s292 + $0x70] sm:$0xff] %vm1076, %v1032
      %1092 = vst.msk [vmem:[%s292 + $0x78] sm:$0xff] %vm1076, %v1034
      %1093 = vst.msk [vmem:[%s292 + $0x80] sm:$0xff] %vm1076, %v1037
      %1094 = vst.msk [vmem:[%s292 + $0x88] sm:$0xff] %vm1076, %v1039
      %1095 = vst.msk [vmem:[%s292 + $0x90] sm:$0xff] %vm1076, %v1042
      %1096 = vst.msk [vmem:[%s292 + $0x98] sm:$0xff] %vm1076, %v1044
      %1097 = vst.msk [vmem:[%s292 + $0xa0] sm:$0xff] %vm1076, %v1047
      %1098 = vst.msk [vmem:[%s292 + $0xa8] sm:$0xff] %vm1076, %v1049
      %1099 = vst.msk [vmem:[%s292 + $0xb0] sm:$0xff] %vm1076, %v1052
      %1100 = vst.msk [vmem:[%s292 + $0xb8] sm:$0xff] %vm1076, %v1054
      %1101 = vst.msk [vmem:[%s292 + $0xc0] sm:$0xff] %vm1076, %v1057
      %1102 = vst.msk [vmem:[%s292 + $0xc8] sm:$0xff] %vm1076, %v1059
      %1103 = vst.msk [vmem:[%s292 + $0xd0] sm:$0xff] %vm1076, %v1062
      %1104 = vst.msk [vmem:[%s292 + $0xd8] sm:$0xff] %vm1076, %v1064
      %1105 = vst.msk [vmem:[%s292 + $0xe0] sm:$0xff] %vm1076, %v1067
      %1106 = vst.msk [vmem:[%s292 + $0xe8] sm:$0xff] %vm1076, %v1069
      %1107 = vst.msk [vmem:[%s292 + $0xf0] sm:$0xff] %vm1076, %v1072
      %1108 = vst.msk [vmem:[%s292 + $0xf8] sm:$0xff] %vm1076, %v1074
      %p1109 = scmp.lt.s32.totalorder %s18, 3
      %s1110 = scalar_select %p1109, %s18, 3
      %s1111 = smul.addr %s1110, 32
      %s1112 = smul.addr %s1111, 8
      %s1113 = scalar_lea.vmem %s7, %s1112
      // Predicated region
      $region49: #{tpu_custom_call.1} parent=47 // pred_check
        %p1114 = pneg %p193
      $region50: #{tpu_custom_call.1} parent=47 // pred_check_branch
        %1116 = sbr.rel (%p1114) target = $region52
      $region51: #{tpu_custom_call.1} parent=47 // pred_region
        _
      $region52: #{tpu_custom_call.1} parent=47 // pred_fallthru
        _
    $region48: #{tpu_custom_call.1} parent=5 // pred_fallthru
      _
    %p1117 = scmp.le.s32.totalorder 2, %s13
    // Predicated region
    $region53: #{tpu_custom_call.1} parent=5 // pred_check
      %p1118 = pneg %p1117
    $region54: #{tpu_custom_call.1} parent=5 // pred_check_branch
      %1120 = sbr.rel (%p1118) target = $region56
    $region55: #{tpu_custom_call.1} parent=5 // pred_region
      %s1121 = ssub.s32 %s13, 2
      // Predicated region
      $region57: #{tpu_custom_call.1} parent=55 // pred_check
        %p1122 = pneg %p199
      $region58: #{tpu_custom_call.1} parent=55 // pred_check_branch
        %1124 = sbr.rel (%p1122) target = $region60
      $region59: #{tpu_custom_call.1} parent=55 // pred_region
        %p1125 = scmp.lt.s32.totalorder %s19, 3
        %s1126 = scalar_select %p1125, %s19, 3
        %s1127 = smul.addr %s1126, 32
        %s1128 = smul.addr %s1127, 8
        %s1129 = scalar_lea.vmem %s7, %s1128
      $region60: #{tpu_custom_call.1} parent=55 // pred_fallthru
        _
    $region56: #{tpu_custom_call.1} parent=5 // pred_fallthru
      _
  $region6: #{tpu_custom_call.1} parent=0 // loop_footer
    %s17 = sadd.s32 1, %s13
  $region7: #{tpu_custom_call.1} parent=0 // loop_footer_branch
    %12 = sbr.rel target = $region3
  $region8: #{tpu_custom_call.1} parent=0 // loop_exit
    _

</llo_original>
